<compile_context>
chip_gen: v7x
topology: tpu7x:2x2x1
jax: 0.10.0
libtpu: 0.0.40
codegen_flags: <defaults>
</compile_context>

<pallas_src>
import functools

import jax
import jax.numpy as jnp
from jax import lax
from jax.experimental import pallas as pl
from jax.experimental.pallas import tpu as pltpu


def _ka_kernel(s_ref, t_ref, m_ref, out_ref, *, inv_dmm):
    s = s_ref[...]
    # One MXU matmul per tile: [TILE_N, Ds] @ [Ds, Dt] -> [TILE_N, Dt], f32 accumulate.
    proj = jnp.dot(s, m_ref[...], preferred_element_type=jnp.float32)
    # Row-wise reduction lands on the XLU; divide folded into a constant multiply.
    logit = jnp.sum(proj * t_ref[...].astype(jnp.float32), axis=1, keepdims=True) * inv_dmm
    gate = jax.nn.sigmoid(logit)                                    # EUP
    out_ref[...] = (s.astype(jnp.float32) * gate).astype(out_ref.dtype)


def _ka_kernel_with_gate(s_ref, t_ref, m_ref, out_ref, gate_ref, *, inv_dmm):
    s = s_ref[...]
    proj = jnp.dot(s, m_ref[...], preferred_element_type=jnp.float32)
    logit = jnp.sum(proj * t_ref[...].astype(jnp.float32), axis=1, keepdims=True) * inv_dmm
    gate = jax.nn.sigmoid(logit)
    out_ref[...] = (s.astype(jnp.float32) * gate).astype(out_ref.dtype)
    gate_ref[...] = gate.astype(gate_ref.dtype)


def _choose_tile_n(n, ds, dt, itemsize):
    """Pick a row-tile that keeps one pipeline buffer set well under scoped VMEM."""
    bytes_per_row = (2 * ds + dt) * itemsize          # source in + output + target in
    budget = 6 * 1024 * 1024                          # per buffer set; 2x for double-buffer
    tile = budget // max(bytes_per_row, 1)
    return int(max(8, min(tile, 2048)))


def kernel_attention_module(source_feat, target_feat, ws_weight, wt_weight,
                            return_gate_value=False, tile_n=None):
    """ws_weight / wt_weight in torch nn.Linear layout: [dim_mm, dim_in]."""
    n, ds = source_feat.shape
    _, dt = target_feat.shape
    dmm = ws_weight.shape[0]

    # Fused bilinear weight M = Ws^T @ Wt, shape [Ds, Dt]. dot_general contracts the
    # torch-layout weights directly (no explicit transpose op, no extra HBM round trip
    # of transposed weights per call).
    m = lax.dot_general(
        ws_weight, wt_weight,
        dimension_numbers=(((0,), (0,)), ((), ())),
        preferred_element_type=jnp.float32,
    ).astype(source_feat.dtype)

    if tile_n is None:
        tile_n = _choose_tile_n(n, ds, dt, jnp.dtype(source_feat.dtype).itemsize)
    tile_n = min(int(tile_n), n)
    if tile_n < n:
        # Partial-tile grids need a (multiple-of-8) sublane block size.
        tile_n = max(8, (tile_n // 8) * 8)

    grid = (pl.cdiv(n, tile_n),)
    inv_dmm = 1.0 / float(dmm)

    in_specs = [
        pl.BlockSpec((tile_n, ds), lambda i: (i, 0)),   # source rows (pipelined)
        pl.BlockSpec((tile_n, dt), lambda i: (i, 0)),   # target rows (pipelined)
        pl.BlockSpec((ds, dt), lambda i: (0, 0)),       # fused weight, VMEM-resident
    ]
    compiler_params = pltpu.CompilerParams(dimension_semantics=("parallel",))

    if return_gate_value:
        out, gate = pl.pallas_call(
            functools.partial(_ka_kernel_with_gate, inv_dmm=inv_dmm),
            out_shape=(
                jax.ShapeDtypeStruct((n, ds), source_feat.dtype),
                jax.ShapeDtypeStruct((n, 1), jnp.float32),
            ),
            grid=grid,
            in_specs=in_specs,
            out_specs=(
                pl.BlockSpec((tile_n, ds), lambda i: (i, 0)),
                pl.BlockSpec((tile_n, 1), lambda i: (i, 0)),
            ),
            compiler_params=compiler_params,
        )(source_feat, target_feat, m)
        return out, gate

    out = pl.pallas_call(
        functools.partial(_ka_kernel, inv_dmm=inv_dmm),
        out_shape=jax.ShapeDtypeStruct((n, ds), source_feat.dtype),
        grid=grid,
        in_specs=in_specs,
        out_specs=pl.BlockSpec((tile_n, ds), lambda i: (i, 0)),
        compiler_params=compiler_params,
    )(source_feat, target_feat, m)
    return out


def _reference(source_feat, target_feat, ws_weight, wt_weight):
    ps = source_feat @ ws_weight.T
    pt = target_feat @ wt_weight.T
    gate = jax.nn.sigmoid(jnp.mean(ps * pt, axis=1, keepdims=True))
    return source_feat * gate, gate


if __name__ == "__main__":
    key = jax.random.PRNGKey(0)
    k1, k2, k3, k4, k5, k6 = jax.random.split(key, 6)

    N, DIM_SOURCE, DIM_TARGET, DIM_MM = 8, 32, 24, 16

    source_feat = jax.random.normal(k1, (N, DIM_SOURCE), dtype=jnp.float32)
    target_feat = jax.random.normal(k2, (N, DIM_TARGET), dtype=jnp.float32)
    # Deterministic "parameters" in torch nn.Linear layout: [out, in].
    ws_weight = jax.random.normal(k3, (DIM_MM, DIM_SOURCE), dtype=jnp.float32) * 0.1
    wt_weight = jax.random.normal(k4, (DIM_MM, DIM_TARGET), dtype=jnp.float32) * 0.1

    # Gate-returning variant (single tile: N <= TILE_N).
    out, gate = kernel_attention_module(
        source_feat, target_feat, ws_weight, wt_weight, return_gate_value=True)
    jax.block_until_ready((out, gate))

    ref_out, ref_gate = _reference(source_feat, target_feat, ws_weight, wt_weight)
    assert out.shape == (N, DIM_SOURCE)
    assert gate.shape == (N, 1)
    assert jnp.allclose(out, ref_out, atol=1e-5, rtol=1e-5)
    assert jnp.allclose(gate, ref_gate, atol=1e-5, rtol=1e-5)

    # Fast path without the lane-width-1 gate output.
    out_only = kernel_attention_module(source_feat, target_feat, ws_weight, wt_weight)
    jax.block_until_ready(out_only)
    assert jnp.allclose(out_only, ref_out, atol=1e-5, rtol=1e-5)

    # Larger N with a forced small tile to exercise the pipelined multi-tile path
    # (including a partial remainder block).
    N2 = 300
    source2 = jax.random.normal(k5, (N2, DIM_SOURCE), dtype=jnp.float32)
    target2 = jax.random.normal(k6, (N2, DIM_TARGET), dtype=jnp.float32)
    out2, gate2 = kernel_attention_module(
        source2, target2, ws_weight, wt_weight, return_gate_value=True, tile_n=64)
    jax.block_until_ready((out2, gate2))
    ref_out2, ref_gate2 = _reference(source2, target2, ws_weight, wt_weight)
    assert jnp.allclose(out2, ref_out2, atol=1e-5, rtol=1e-5)
    assert jnp.allclose(gate2, ref_gate2, atol=1e-5, rtol=1e-5)

    print("KERNEL_OK")
</pallas_src>

<mosaic_0001>
module attributes {stable_mosaic.version = 11 : i64} {
  func.func @_ka_kernel_with_gate(%arg0: i32, %arg1: memref<8x32xf32, #tpu.memory_space<vmem>>, %arg2: memref<8x24xf32, #tpu.memory_space<vmem>>, %arg3: memref<32x24xf32, #tpu.memory_space<vmem>>, %arg4: memref<8x32xf32, #tpu.memory_space<vmem>>, %arg5: memref<8x1xf32, #tpu.memory_space<vmem>>) attributes {dimension_semantics = [#tpu.dimension_semantics<parallel>], iteration_bounds = array<i64: 1>, scalar_prefetch = 0 : i64, scratch_operands = 0 : i64, tpu.core_type = #tpu.core_type<tc>, window_params = [{transform_indices = @transform_0, window_bounds = array<i64: 8, 32>}, {transform_indices = @transform_1, window_bounds = array<i64: 8, 24>}, {pipeline_mode = #tpu.pipeline_mode<synchronous>, transform_indices = @transform_2, window_bounds = array<i64: 32, 24>}, {transform_indices = @transform_3, window_bounds = array<i64: 8, 32>}, {transform_indices = @transform_4, window_bounds = array<i64: 8, 1>}]} {
    %c0 = arith.constant 0 : index
    %c0_0 = arith.constant 0 : index
    %0 = vector.load %arg1[%c0, %c0_0] : memref<8x32xf32, #tpu.memory_space<vmem>>, vector<8x32xf32>
    %c0_1 = arith.constant 0 : index
    %c0_2 = arith.constant 0 : index
    %1 = vector.load %arg3[%c0_1, %c0_2] : memref<32x24xf32, #tpu.memory_space<vmem>>, vector<32x24xf32>
    %cst = arith.constant dense<0.000000e+00> : vector<8x24xf32>
    %2 = tpu.matmul %0, %1, %cst {dimension_numbers = #tpu.dot_dimension_numbers<[1], [0], [0], [1], [0, 0, 1, 1], [], []>} : vector<8x32xf32>, vector<32x24xf32>, vector<8x24xf32> -> vector<8x24xf32>
    %c0_3 = arith.constant 0 : index
    %c0_4 = arith.constant 0 : index
    %3 = vector.load %arg2[%c0_3, %c0_4] : memref<8x24xf32, #tpu.memory_space<vmem>>, vector<8x24xf32>
    %4 = arith.mulf %2, %3 : vector<8x24xf32>
    %cst_5 = arith.constant dense<0.000000e+00> : vector<8xf32>
    %5 = vector.multi_reduction <add>, %4, %cst_5 [1] : vector<8x24xf32> to vector<8xf32>
    %6 = vector.shape_cast %5 : vector<8xf32> to vector<8x1xf32>
    %cst_6 = arith.constant 6.250000e-02 : f32
    %7 = vector.broadcast %cst_6 : f32 to vector<8x1xf32>
    %8 = arith.mulf %6, %7 : vector<8x1xf32>
    %9 = arith.negf %8 : vector<8x1xf32>
    %10 = math.exp %9 : vector<8x1xf32>
    %cst_7 = arith.constant 1.000000e+00 : f32
    %11 = vector.broadcast %cst_7 : f32 to vector<8x1xf32>
    %12 = arith.addf %11, %10 : vector<8x1xf32>
    %13 = arith.divf %11, %12 : vector<8x1xf32>
    %14 = vector.broadcast %13 : vector<8x1xf32> to vector<8x32xf32>
    %15 = arith.mulf %0, %14 : vector<8x32xf32>
    %c0_8 = arith.constant 0 : index
    %c0_9 = arith.constant 0 : index
    %16 = vector.load %arg4[%c0_8, %c0_9] : memref<8x32xf32, #tpu.memory_space<vmem>>, vector<8x32xf32>
    tpu.vector_store %arg4[%c0_8, %c0_9], %15 {strides = array<i32>} : memref<8x32xf32, #tpu.memory_space<vmem>>, vector<8x32xf32>,
    %c0_10 = arith.constant 0 : index
    %c0_11 = arith.constant 0 : index
    %17 = vector.load %arg5[%c0_10, %c0_11] : memref<8x1xf32, #tpu.memory_space<vmem>>, vector<8x1xf32>
    tpu.vector_store %arg5[%c0_10, %c0_11], %13 {strides = array<i32>} : memref<8x1xf32, #tpu.memory_space<vmem>>, vector<8x1xf32>,
    return
  }
  func.func @transform_0(%arg0: i32) -> (i32, i32) {
    %c0_i32 = arith.constant 0 : i32
    %c0_i32_0 = arith.constant 0 : i32
    return %arg0, %c0_i32 : i32, i32
  }
  func.func @transform_1(%arg0: i32) -> (i32, i32) {
    %c0_i32 = arith.constant 0 : i32
    %c0_i32_0 = arith.constant 0 : i32
    return %arg0, %c0_i32 : i32, i32
  }
  func.func @transform_2(%arg0: i32) -> (i32, i32) {
    %c0_i32 = arith.constant 0 : i32
    %c0_i32_0 = arith.constant 0 : i32
    %c0_i32_1 = arith.constant 0 : i32
    return %c0_i32, %c0_i32_0 : i32, i32
  }
  func.func @transform_3(%arg0: i32) -> (i32, i32) {
    %c0_i32 = arith.constant 0 : i32
    %c0_i32_0 = arith.constant 0 : i32
    return %arg0, %c0_i32 : i32, i32
  }
  func.func @transform_4(%arg0: i32) -> (i32, i32) {
    %c0_i32 = arith.constant 0 : i32
    %c0_i32_0 = arith.constant 0 : i32
    return %arg0, %c0_i32 : i32, i32
  }
}

</mosaic_0001>

<llo_original>
// kernel: tpu_custom_call.1
$region0: #{tpu_custom_call.1}
  #allocation0 [shape = 'u32[]', space=smem, size = 0x4, offset = 0x4, fixed_abs, tag = 'smem constant byte address 0x4 - core index']
  #allocation1 [shape = 'u32[144,128]{1,0:T(1,128)}', space=vmem, size = 0x12000, scoped, tag = 'internal scratch']
  %s0 = inlined_call_operand.vmem [shape: f32[8,32], index: 0, kind: input, shape index: {}]
  %s1 = inlined_call_operand.vmem [shape: f32[8,24], index: 1, kind: input, shape index: {}]
  %s2 = inlined_call_operand.vmem [shape: f32[32,24], index: 2, kind: input, shape index: {}]
  %s3 = inlined_call_operand.hbm [shape: f32[8,32], index: 3, kind: output, shape index: {0}]
  %s4 = inlined_call_operand.vmem [shape: f32[8,1], index: 4, kind: output, shape index: {1}]
  %5 = xla_tuple %s3, %s4
  %s6 = sld [smem:[#allocation0]]
  $region30: #{tpu_custom_call.1} parent=0
    _
  %s8 = ssub.s32 1, %s6
  %s9 = scalar_select 0, %s8, %s6
  $region1: #{tpu_custom_call.1} parent=0
    #allocation2 [shape = 'u8[4096]{0}', space=vmem, size = 0x1000, scoped, tag = 'output window, operand 0, single buffered']
    #allocation3 [shape = 's32[1]{0}', space=sflag, size = 0x4, scoped, tag = 'scoped memory for tpu_custom_call.1']
    %10 = vsyncpa [#allocation3], 0
    // Predicated region
    $region2: #{tpu_custom_call.1} parent=1 // pred_check
      _
    $region3: #{tpu_custom_call.1} parent=1 // pred_check_branch
      %12 = sbr.rel (0) target = $region5
    $region4: #{tpu_custom_call.1} parent=1 // pred_region
      _
    $region5: #{tpu_custom_call.1} parent=1 // pred_fallthru
      _
    // Predicated region
    $region6: #{tpu_custom_call.1} parent=1 // pred_check
      _
    $region7: #{tpu_custom_call.1} parent=1 // pred_check_branch
      %14 = sbr.rel (0) target = $region9
    $region8: #{tpu_custom_call.1} parent=1 // pred_region
      _
    $region9: #{tpu_custom_call.1} parent=1 // pred_fallthru
      _
    // Predicated region
    $region10: #{tpu_custom_call.1} parent=1 // pred_check
      _
    $region11: #{tpu_custom_call.1} parent=1 // pred_check_branch
      %16 = sbr.rel (0) target = $region13
    $region12: #{tpu_custom_call.1} parent=1 // pred_region
      _
    $region13: #{tpu_custom_call.1} parent=1 // pred_fallthru
      _
    %v17 = vld [vmem:[%s0] sm:$0xff]
    %v18 = vld [vmem:[%s2] sm:$0xff]
    %v19 = vld [vmem:[%s2 + $0x8] sm:$0xff]
    %v20 = vld [vmem:[%s2 + $0x10] sm:$0xff]
    %v21 = vld [vmem:[%s2 + $0x18] sm:$0xff]
    %vm22 = vcmask 261120
    %v24 = vsel %vm22, %v17, 0
    %26 = vmatprep.subr.mxu0 0.0
    %27 = vmatpush1.msra.mxu0 %v18
    %28 = vmatprep.subr.mxu0 0.0
    %29 = vmatpush1.msra.mxu0 %v19
    %30 = vmatprep.subr.mxu0 0.0
    %31 = vmatpush1.msra.mxu0 %v20
    %32 = vmatprep.subr.mxu0 0.0
    %33 = vmatpush1.msra.mxu0 %v21
    %34 = vmatprep.subr.mxu0 0.0
    %35 = vmatpush1.msra.mxu0 0.0
    %36 = vmatprep.subr.mxu0 0.0
    %37 = vmatpush1.msra.mxu0 0.0
    %38 = vmatprep.subr.mxu0 0.0
    %39 = vmatpush1.msra.mxu0 0.0
    %40 = vmatprep.subr.mxu0 0.0
    %41 = vmatpush1.msra.mxu0 0.0
    %42 = vmatprep.subr.mxu0 0.0
    %43 = vmatpush1.msra.mxu0 0.0
    %44 = vmatprep.subr.mxu0 0.0
    %45 = vmatpush1.msra.mxu0 0.0
    %46 = vmatprep.subr.mxu0 0.0
    %47 = vmatpush1.msra.mxu0 0.0
    %48 = vmatprep.subr.mxu0 0.0
    %49 = vmatpush1.msra.mxu0 0.0
    %50 = vmatprep.subr.mxu0 0.0
    %51 = vmatpush1.msra.mxu0 0.0
    %52 = vmatprep.subr.mxu0 0.0
    %53 = vmatpush1.msra.mxu0 0.0
    %54 = vmatprep.subr.mxu0 0.0
    %55 = vmatpush1.msra.mxu0 0.0
    %56 = vmatprep.subr.mxu0 0.0
    %57 = vmatpush1.msra.mxu0 0.0
    %58 = vmatprep.subr.mxu0 0.0
    %59 = vmatpush1.msra.mxu0 0.0
    %60 = vmatprep.subr.mxu0 0.0
    %61 = vmatpush1.msra.mxu0 0.0
    %62 = vmatprep.subr.mxu0 0.0
    %63 = vmatpush1.msra.mxu0 0.0
    %64 = vmatprep.subr.mxu0 0.0
    %65 = vmatpush1.msra.mxu0 0.0
    %66 = vmatprep.subr.mxu0 0.0
    %67 = vmatpush1.msra.mxu0 0.0
    %68 = vmatprep.subr.mxu0 0.0
    %69 = vmatpush1.msra.mxu0 0.0
    %70 = vmatprep.subr.mxu0 0.0
    %71 = vmatpush1.msra.mxu0 0.0
    %72 = vmatprep.subr.mxu0 0.0
    %73 = vmatpush1.msra.mxu0 0.0
    %74 = vmatprep.subr.mxu0 0.0
    %75 = vmatpush1.msra.mxu0 0.0
    %76 = vmatprep.subr.mxu0 0.0
    %77 = vmatpush1.msra.mxu0 0.0
    %78 = vmatprep.subr.mxu0 0.0
    %79 = vmatpush1.msra.mxu0 0.0
    %80 = vmatprep.subr.mxu0 0.0
    %81 = vmatpush1.msra.mxu0 0.0
    %82 = vmatprep.subr.mxu0 0.0
    %83 = vmatpush1.msra.mxu0 0.0
    %84 = vmatprep.subr.mxu0 0.0
    %85 = vmatpush1.msra.mxu0 0.0
    %86 = vmatprep.subr.mxu0 0.0
    %87 = vmatpush1.msra.mxu0 0.0
    %88 = vmatprep.subr.mxu0 0.0
    %89 = vmatpush1.msra.mxu0 0.0
    %90 = vmatprep.mubr.f32.mxu0 0.0
    %91 = vmatmul.mubr.f32.gmra.mrb[0].mxu0 %v24
    %v92 = vpop.f32.mrb[0].mxu0
    %v93 = vadd.f32 0.0, %v92
    %v94 = vpop.f32.mrb[0].mxu0
    %95 = vdwg.mxu0
    %v96 = vld [vmem:[%s1] sm:$0xff]
    %v97 = vmul.f32 %v93, %v96
    %vm98 = vcmask 195584
    %v99 = vsel %vm98, %v97, 0.0
    %100 = vadd.xlane.f32.xlu0 %v99
    %v101 = vpop.xlane.xlu0 %100
    %v102 = vmul.f32 %v101, 0.0625
    %v103 = vxor.u32 %v102, 2147483648
    %v104 = vmul.f32 %v103, 1.442695
    %v105 = vpow.pop %v104
    %v106 = vadd.f32 %v105, 1.0
    %v107 = vrcp.pop %v106
    %v108 = vmul.f32 1.0, %v107
    %v109 = vmul.f32 %v17, %v108
    %110 = vst.msk [vmem:[#allocation2] sm:$0xff] %vm22, %v109
    %vm111 = vcmask 7168
    %112 = vst.msk [vmem:[%s4] sm:$0xff] %vm111, %v108
    // Predicated region
    $region14: #{tpu_custom_call.1} parent=1 // pred_check
      _
    $region15: #{tpu_custom_call.1} parent=1 // pred_check_branch
      %114 = sbr.rel (0) target = $region17
    $region16: #{tpu_custom_call.1} parent=1 // pred_region
      %s116 = ssub.s32 128, 128
      %117 = vsyncadd [#allocation3], %s116
      %s119 = sshll.u32 [#allocation2], 4
      %s120 = int_to_ptr.vmem [resolvable:$true] %s119
      %122 = dma.vmem_to_hbm [thread:$0]  %s120, 128, %s3, [#allocation3]
    $region17: #{tpu_custom_call.1} parent=1 // pred_fallthru
      _
    // Predicated region
    $region18: #{tpu_custom_call.1} parent=1 // pred_check
      _
    $region19: #{tpu_custom_call.1} parent=1 // pred_check_branch
      %124 = sbr.rel (0) target = $region21
    $region20: #{tpu_custom_call.1} parent=1 // pred_region
      _
    $region21: #{tpu_custom_call.1} parent=1 // pred_fallthru
      _
    // Predicated region
    $region22: #{tpu_custom_call.1} parent=1 // pred_check
      _
    $region23: #{tpu_custom_call.1} parent=1 // pred_check_branch
      %126 = sbr.rel (0) target = $region25
    $region24: #{tpu_custom_call.1} parent=1 // pred_region
      %127 = dma.done [#allocation3], 128
    $region25: #{tpu_custom_call.1} parent=1 // pred_fallthru
      _
    // Predicated region
    $region26: #{tpu_custom_call.1} parent=1 // pred_check
      _
    $region27: #{tpu_custom_call.1} parent=1 // pred_check_branch
      %129 = sbr.rel (0) target = $region29
    $region28: #{tpu_custom_call.1} parent=1 // pred_region
      _
    $region29: #{tpu_custom_call.1} parent=1 // pred_fallthru
      _
    %130 = vsyncpa [#allocation3], 1

</llo_original>
